<compile_context>
chip_gen: v7x
topology: tpu7x:2x2x1
jax: 0.10.0
libtpu: 0.0.40
codegen_flags: <defaults>
</compile_context>

<pallas_src>
import functools
import math

import jax
import jax.numpy as jnp
from jax.experimental import pallas as pl
from jax.experimental.pallas import tpu as pltpu


def _round_up(x, m):
    return (x + m - 1) // m * m


def _sublayer_connection_kernel(x_ref, w_ref, bsub_ref, a2_ref, b2_ref, o_ref,
                                *, dropout_p, eps, d, tile_rows, seed_key,
                                drop_thresh, inv_keep, use_tpu_prng):
    x_in = x_ref[...]                                    # (TR, D), input dtype

    # --- sublayer: dense projection, bf16 operands -> f32 accumulation (MXU)
    y = jnp.dot(x_in.astype(jnp.bfloat16), w_ref[...],
                preferred_element_type=jnp.float32)
    y = y + bsub_ref[...].astype(jnp.float32)            # (1, D) broadcast

    # --- dropout folded into a single multiply (keep w.p. 1-p, scale 1/(1-p))
    if dropout_p > 0.0:
        if use_tpu_prng:
            # Hardware PRNG: keeps the mask generation off the VALU hot slot.
            pltpu.prng_seed(seed_key, pl.program_id(0))
            bits = pltpu.bitcast(pltpu.prng_random_bits(y.shape), jnp.uint32)
        else:
            # Portable counter-based hash fallback (interpret / non-TPU).
            row = jax.lax.broadcasted_iota(jnp.uint32, y.shape, 0)
            col = jax.lax.broadcasted_iota(jnp.uint32, y.shape, 1)
            base = (pl.program_id(0) * tile_rows).astype(jnp.uint32)
            h = (base + row) * jnp.uint32(d) + col
            h = h ^ jnp.uint32(seed_key)
            h = h ^ (h >> jnp.uint32(16))
            h = h * jnp.uint32(0x7FEB352D)
            h = h ^ (h >> jnp.uint32(15))
            h = h * jnp.uint32(0x846CA68B)
            h = h ^ (h >> jnp.uint32(16))
            bits = h
        keep = bits >= jnp.uint32(drop_thresh)
        y = y * jnp.where(keep, jnp.float32(inv_keep), jnp.float32(0.0))

    # --- residual add: cast x to f32 only here (short live range) -----------
    z = x_in.astype(jnp.float32) + y

    # --- LayerNorm, torch-style: unbiased std (N-1), eps added to std -------
    mean = jnp.sum(z, axis=-1, keepdims=True) * jnp.float32(1.0 / d)
    z = z - mean                                         # `centered` reuses z
    var_unb = jnp.sum(z * z, axis=-1, keepdims=True) * jnp.float32(1.0 / (d - 1))
    inv = jnp.float32(1.0) / (jnp.sqrt(var_unb) + jnp.float32(eps))   # exact
    o_ref[...] = (a2_ref[...].astype(jnp.float32) * (z * inv)
                  + b2_ref[...].astype(jnp.float32)).astype(o_ref.dtype)


def _tpu_defaults():
    """(tile_rows, vmem_limit_bytes) per TPU generation."""
    try:
        kind = jax.devices()[0].device_kind.lower()
    except Exception:
        kind = ""
    if "v5" in kind or "v6" in kind:
        # 128 MiB physical VMEM: big row tiles + generous scoped limit.
        return 512, 100 * 1024 * 1024
    # v7x (64 MiB per TensorCore) or unknown: leave internal-scratch headroom.
    return 256, 48 * 1024 * 1024


def _const_spec(shape):
    """Constant (grid-invariant) operand: single-buffered BlockSpec."""
    index_map = lambda i: (0,) * len(shape)
    try:
        return pl.BlockSpec(shape, index_map, pipeline_mode=pl.Buffered(1))
    except TypeError:  # older jax without pipeline_mode on BlockSpec
        return pl.BlockSpec(shape, index_map)


def sublayer_connection(x, w_sub, b_sub, a2, b2, seed,
                        *, dropout_p=0.1, eps=1e-6,
                        tile_rows=None, vmem_limit_bytes=None):
    """x: (B, S, D); w_sub: (D, D); b_sub, a2, b2: (D,); seed: python int."""
    assert 0.0 <= dropout_p < 1.0, "dropout_p must be in [0, 1)"
    B, S, D = x.shape
    assert D > 1, "LayerNorm with unbiased std requires D > 1"
    rows = B * S

    def_tr, def_vmem = _tpu_defaults()
    vmem = int(vmem_limit_bytes or def_vmem)
    tr = int(tile_rows or def_tr)
    tr = min(tr, _round_up(rows, 8))

    # Cap the row tile so that single-buffered W + double-buffered x/out tiles
    # + the (tr, D) f32 temporaries fit inside the VMEM budget.
    w_bytes = D * D * 2                          # bf16 W, single-buffered
    itm = jnp.dtype(x.dtype).itemsize
    per_row = D * (4 * itm + 5 * 4)              # 2x in-buf + 2x out-buf + ~5 f32 temps
    budget = vmem - w_bytes - (1 << 20)
    if budget > 0:
        tr = min(tr, max(8, (budget // per_row) // 8 * 8))
    else:
        tr = 8  # TODO(synk): W alone exceeds the budget -> needs K-tiled matmul
    n_tiles = pl.cdiv(rows, tr)

    # No host-side padding: block last dims equal the full array dims, and the
    # ragged last row tile is handled by Pallas boundary masking.
    x2 = x.reshape(rows, D)
    w = w_sub.astype(jnp.bfloat16)
    bs = b_sub.reshape(1, D)
    a2p = a2.reshape(1, D)
    b2p = b2.reshape(1, D)

    seed_key = (int(seed) * 0x9E3779B1) & 0x7FFFFFFF
    drop_thresh = min(int(round(dropout_p * (1 << 32))), (1 << 32) - 1)
    inv_keep = (1.0 / (1.0 - dropout_p)) if dropout_p > 0.0 else 1.0
    use_tpu_prng = jax.default_backend() == "tpu"

    kernel = functools.partial(
        _sublayer_connection_kernel,
        dropout_p=float(dropout_p), eps=float(eps), d=D, tile_rows=tr,
        seed_key=seed_key, drop_thresh=drop_thresh, inv_keep=inv_keep,
        use_tpu_prng=use_tpu_prng)

    out = pl.pallas_call(
        kernel,
        out_shape=jax.ShapeDtypeStruct((rows, D), x.dtype),
        grid=(n_tiles,),
        in_specs=[
            pl.BlockSpec((tr, D), lambda i: (i, 0)),   # x tile (pipelined, 2-buf)
            _const_spec((D, D)),                       # W (bf16, VMEM-resident, 1-buf)
            _const_spec((1, D)),                       # b_sub
            _const_spec((1, D)),                       # a_2
            _const_spec((1, D)),                       # b_2
        ],
        out_specs=pl.BlockSpec((tr, D), lambda i: (i, 0)),
        compiler_params=pltpu.CompilerParams(
            dimension_semantics=("parallel",),         # megacore sharding on v7x
            vmem_limit_bytes=vmem),
    )(x2, w, bs, a2p, b2p)

    return out.reshape(B, S, D)


if __name__ == "__main__":
    # Small shapes consistent with the module: (batch, seq, hidden)
    B, S, D = 2, 8, 32
    dropout_p = 0.1

    key = jax.random.PRNGKey(0)
    kx, kw, kb = jax.random.split(key, 3)

    x = jax.random.normal(kx, (B, S, D), dtype=jnp.float32)

    # Deterministic parameter init:
    #   LayerNorm:  a_2 = ones(D), b_2 = zeros(D)   (as in __init__)
    #   sublayer (dense): small random weights from a fixed key
    a2 = jnp.ones((D,), dtype=jnp.float32)
    b2 = jnp.zeros((D,), dtype=jnp.float32)
    w_sub = jax.random.normal(kw, (D, D), dtype=jnp.float32) * (1.0 / math.sqrt(D))
    b_sub = jax.random.normal(kb, (D,), dtype=jnp.float32) * 0.01

    out = sublayer_connection(x, w_sub, b_sub, a2, b2, seed=1234,
                              dropout_p=dropout_p, eps=1e-6)
    jax.block_until_ready(out)

    assert out.shape == (B, S, D)
    assert out.dtype == x.dtype
    assert bool(jnp.all(jnp.isfinite(out)))
    print("KERNEL_OK")
</pallas_src>

<mosaic_0001>
module attributes {stable_mosaic.version = 11 : i64} {
  func.func @_sublayer_connection_kernel(%arg0: i32, %arg1: memref<16x32xf32, #tpu.memory_space<vmem>>, %arg2: memref<32x32xbf16, #tpu.memory_space<vmem>>, %arg3: memref<1x32xf32, #tpu.memory_space<vmem>>, %arg4: memref<1x32xf32, #tpu.memory_space<vmem>>, %arg5: memref<1x32xf32, #tpu.memory_space<vmem>>, %arg6: memref<16x32xf32, #tpu.memory_space<vmem>>) attributes {dimension_semantics = [#tpu.dimension_semantics<parallel>], iteration_bounds = array<i64: 1>, scalar_prefetch = 0 : i64, scratch_operands = 0 : i64, tpu.core_type = #tpu.core_type<tc>, window_params = [{transform_indices = @transform_0, window_bounds = array<i64: 16, 32>}, {pipeline_mode = #tpu.pipeline_mode<synchronous>, transform_indices = @transform_1, window_bounds = array<i64: 32, 32>}, {pipeline_mode = #tpu.pipeline_mode<synchronous>, transform_indices = @transform_2, window_bounds = array<i64: 1, 32>}, {pipeline_mode = #tpu.pipeline_mode<synchronous>, transform_indices = @transform_3, window_bounds = array<i64: 1, 32>}, {pipeline_mode = #tpu.pipeline_mode<synchronous>, transform_indices = @transform_4, window_bounds = array<i64: 1, 32>}, {transform_indices = @transform_5, window_bounds = array<i64: 16, 32>}]} {
    %c0 = arith.constant 0 : index
    %c0_0 = arith.constant 0 : index
    %0 = vector.load %arg1[%c0, %c0_0] : memref<16x32xf32, #tpu.memory_space<vmem>>, vector<16x32xf32>
    %1 = arith.truncf %0 : vector<16x32xf32> to vector<16x32xbf16>
    %c0_1 = arith.constant 0 : index
    %c0_2 = arith.constant 0 : index
    %2 = vector.load %arg2[%c0_1, %c0_2] : memref<32x32xbf16, #tpu.memory_space<vmem>>, vector<32x32xbf16>
    %cst = arith.constant dense<0.000000e+00> : vector<16x32xf32>
    %3 = tpu.matmul %1, %2, %cst {dimension_numbers = #tpu.dot_dimension_numbers<[1], [0], [0], [1], [0, 0, 1, 1], [], []>} : vector<16x32xbf16>, vector<32x32xbf16>, vector<16x32xf32> -> vector<16x32xf32>
    %c0_3 = arith.constant 0 : index
    %c0_4 = arith.constant 0 : index
    %4 = vector.load %arg3[%c0_3, %c0_4] : memref<1x32xf32, #tpu.memory_space<vmem>>, vector<1x32xf32>
    %5 = vector.broadcast %4 : vector<1x32xf32> to vector<16x32xf32>
    %6 = arith.addf %3, %5 : vector<16x32xf32>
    %7 = tpu.iota {dimensions = array<i32: 0>} : vector<16x32xi32>
    %8 = tpu.iota {dimensions = array<i32: 1>} : vector<16x32xi32>
    %c16_i32 = arith.constant 16 : i32
    %9 = arith.muli %arg0, %c16_i32 : i32
    %10 = vector.broadcast %9 : i32 to vector<16x32xi32>
    %11 = arith.addi %10, %7 : vector<16x32xi32>
    %c32_i32 = arith.constant 32 : i32
    %12 = vector.broadcast %c32_i32 : i32 to vector<16x32xi32>
    %13 = arith.muli %11, %12 : vector<16x32xi32>
    %14 = arith.addi %13, %8 : vector<16x32xi32>
    %c661165874_i32 = arith.constant 661165874 : i32
    %15 = vector.broadcast %c661165874_i32 : i32 to vector<16x32xi32>
    %16 = arith.xori %14, %15 : vector<16x32xi32>
    %c16_i32_5 = arith.constant 16 : i32
    %17 = vector.broadcast %c16_i32_5 : i32 to vector<16x32xi32>
    %18 = arith.shrui %16, %17 : vector<16x32xi32>
    %19 = arith.xori %16, %18 : vector<16x32xi32>
    %c2146121005_i32 = arith.constant 2146121005 : i32
    %20 = vector.broadcast %c2146121005_i32 : i32 to vector<16x32xi32>
    %21 = arith.muli %19, %20 : vector<16x32xi32>
    %c15_i32 = arith.constant 15 : i32
    %22 = vector.broadcast %c15_i32 : i32 to vector<16x32xi32>
    %23 = arith.shrui %21, %22 : vector<16x32xi32>
    %24 = arith.xori %21, %23 : vector<16x32xi32>
    %c-2073254261_i32 = arith.constant -2073254261 : i32
    %25 = vector.broadcast %c-2073254261_i32 : i32 to vector<16x32xi32>
    %26 = arith.muli %24, %25 : vector<16x32xi32>
    %c16_i32_6 = arith.constant 16 : i32
    %27 = vector.broadcast %c16_i32_6 : i32 to vector<16x32xi32>
    %28 = arith.shrui %26, %27 : vector<16x32xi32>
    %29 = arith.xori %26, %28 : vector<16x32xi32>
    %c429496730_i32 = arith.constant 429496730 : i32
    %30 = vector.broadcast %c429496730_i32 : i32 to vector<16x32xi32>
    %31 = arith.cmpi uge, %29, %30 : vector<16x32xi32>
    %cst_7 = arith.constant 1.11111116 : f32
    %cst_8 = arith.constant 0.000000e+00 : f32
    %32 = vector.broadcast %cst_7 : f32 to vector<16x32xf32>
    %33 = vector.broadcast %cst_8 : f32 to vector<16x32xf32>
    %34 = arith.select %31, %32, %33 : vector<16x32xi1>, vector<16x32xf32>
    %35 = arith.mulf %6, %34 : vector<16x32xf32>
    %36 = arith.addf %0, %35 : vector<16x32xf32>
    %cst_9 = arith.constant dense<0.000000e+00> : vector<16xf32>
    %37 = vector.multi_reduction <add>, %36, %cst_9 [1] : vector<16x32xf32> to vector<16xf32>
    %38 = vector.shape_cast %37 : vector<16xf32> to vector<16x1xf32>
    %cst_10 = arith.constant 3.125000e-02 : f32
    %39 = vector.broadcast %cst_10 : f32 to vector<16x1xf32>
    %40 = arith.mulf %38, %39 : vector<16x1xf32>
    %41 = vector.broadcast %40 : vector<16x1xf32> to vector<16x32xf32>
    %42 = arith.subf %36, %41 : vector<16x32xf32>
    %43 = arith.mulf %42, %42 : vector<16x32xf32>
    %cst_11 = arith.constant dense<0.000000e+00> : vector<16xf32>
    %44 = vector.multi_reduction <add>, %43, %cst_11 [1] : vector<16x32xf32> to vector<16xf32>
    %45 = vector.shape_cast %44 : vector<16xf32> to vector<16x1xf32>
    %cst_12 = arith.constant 0.0322580636 : f32
    %46 = vector.broadcast %cst_12 : f32 to vector<16x1xf32>
    %47 = arith.mulf %45, %46 : vector<16x1xf32>
    %48 = math.sqrt %47 : vector<16x1xf32>
    %cst_13 = arith.constant 9.99999997E-7 : f32
    %49 = vector.broadcast %cst_13 : f32 to vector<16x1xf32>
    %50 = arith.addf %48, %49 : vector<16x1xf32>
    %cst_14 = arith.constant 1.000000e+00 : f32
    %51 = vector.broadcast %cst_14 : f32 to vector<16x1xf32>
    %52 = arith.divf %51, %50 : vector<16x1xf32>
    %c0_15 = arith.constant 0 : index
    %c0_16 = arith.constant 0 : index
    %53 = vector.load %arg4[%c0_15, %c0_16] : memref<1x32xf32, #tpu.memory_space<vmem>>, vector<1x32xf32>
    %54 = vector.broadcast %52 : vector<16x1xf32> to vector<16x32xf32>
    %55 = arith.mulf %42, %54 : vector<16x32xf32>
    %56 = vector.broadcast %53 : vector<1x32xf32> to vector<16x32xf32>
    %57 = arith.mulf %56, %55 : vector<16x32xf32>
    %c0_17 = arith.constant 0 : index
    %c0_18 = arith.constant 0 : index
    %58 = vector.load %arg5[%c0_17, %c0_18] : memref<1x32xf32, #tpu.memory_space<vmem>>, vector<1x32xf32>
    %59 = vector.broadcast %58 : vector<1x32xf32> to vector<16x32xf32>
    %60 = arith.addf %57, %59 : vector<16x32xf32>
    %c0_19 = arith.constant 0 : index
    %c0_20 = arith.constant 0 : index
    %61 = vector.load %arg6[%c0_19, %c0_20] : memref<16x32xf32, #tpu.memory_space<vmem>>, vector<16x32xf32>
    tpu.vector_store %arg6[%c0_19, %c0_20], %60 {strides = array<i32>} : memref<16x32xf32, #tpu.memory_space<vmem>>, vector<16x32xf32>,
    return
  }
  func.func @transform_0(%arg0: i32) -> (i32, i32) {
    %c0_i32 = arith.constant 0 : i32
    %c0_i32_0 = arith.constant 0 : i32
    return %arg0, %c0_i32 : i32, i32
  }
  func.func @transform_1(%arg0: i32) -> (i32, i32) {
    %c0_i32 = arith.constant 0 : i32
    %c0_i32_0 = arith.constant 0 : i32
    %c0_i32_1 = arith.constant 0 : i32
    return %c0_i32, %c0_i32_0 : i32, i32
  }
  func.func @transform_2(%arg0: i32) -> (i32, i32) {
    %c0_i32 = arith.constant 0 : i32
    %c0_i32_0 = arith.constant 0 : i32
    %c0_i32_1 = arith.constant 0 : i32
    return %c0_i32, %c0_i32_0 : i32, i32
  }
  func.func @transform_3(%arg0: i32) -> (i32, i32) {
    %c0_i32 = arith.constant 0 : i32
    %c0_i32_0 = arith.constant 0 : i32
    %c0_i32_1 = arith.constant 0 : i32
    return %c0_i32, %c0_i32_0 : i32, i32
  }
  func.func @transform_4(%arg0: i32) -> (i32, i32) {
    %c0_i32 = arith.constant 0 : i32
    %c0_i32_0 = arith.constant 0 : i32
    %c0_i32_1 = arith.constant 0 : i32
    return %c0_i32, %c0_i32_0 : i32, i32
  }
  func.func @transform_5(%arg0: i32) -> (i32, i32) {
    %c0_i32 = arith.constant 0 : i32
    %c0_i32_0 = arith.constant 0 : i32
    return %arg0, %c0_i32 : i32, i32
  }
}

</mosaic_0001>

<llo_original>
// kernel: tpu_custom_call.1
$region0: #{tpu_custom_call.1}
  #allocation0 [shape = 'u32[]', space=smem, size = 0x4, offset = 0x4, fixed_abs, tag = 'smem constant byte address 0x4 - core index']
  #allocation1 [shape = 'u32[144,128]{1,0:T(1,128)}', space=vmem, size = 0x12000, scoped, tag = 'internal scratch']
  %s0 = inlined_call_operand.hbm [shape: f32[16,32], index: 0, kind: input, shape index: {}]
  %s1 = inlined_call_operand.hbm [shape: bf16[32,32], index: 1, kind: input, shape index: {}]
  %s2 = inlined_call_operand.vmem [shape: f32[1,32], index: 2, kind: input, shape index: {}]
  %s3 = inlined_call_operand.vmem [shape: f32[1,32], index: 3, kind: input, shape index: {}]
  %s4 = inlined_call_operand.vmem [shape: f32[1,32], index: 4, kind: input, shape index: {}]
  %s5 = inlined_call_operand.hbm [shape: f32[16,32], index: 5, kind: output, shape index: {}]
  %s6 = sld [smem:[#allocation0]]
  $region38: #{tpu_custom_call.1} parent=0
    _
  %s8 = ssub.s32 1, %s6
  %s9 = scalar_select 0, %s8, %s6
  $region1: #{tpu_custom_call.1} parent=0
    #allocation2 [shape = 'u8[8192]{0}', space=vmem, size = 0x2000, scoped, tag = 'input window, operand 0, single buffered']
    #allocation3 [shape = 's32[1]{0}', space=sflag, size = 0x4, scoped, tag = 'scoped memory for tpu_custom_call.1']
    #allocation4 [shape = 's32[1]{0}', space=sflag, size = 0x4, scoped, tag = 'scoped memory for tpu_custom_call.1']
    #allocation5 [shape = 'u8[8192]{0}', space=vmem, size = 0x2000, scoped, tag = 'input window, operand 1, single buffered']
    #allocation6 [shape = 's32[1]{0}', space=sflag, size = 0x4, scoped, tag = 'scoped memory for tpu_custom_call.1']
    #allocation7 [shape = 'u8[8192]{0}', space=vmem, size = 0x2000, scoped, tag = 'output window, operand 0, single buffered']
    %10 = vsyncpa [#allocation3], 0
    %11 = vsyncpa [#allocation6], 0
    %12 = vsyncpa [#allocation4], 0
    // Predicated region
    $region2: #{tpu_custom_call.1} parent=1 // pred_check
      _
    $region3: #{tpu_custom_call.1} parent=1 // pred_check_branch
      %14 = sbr.rel (0) target = $region5
    $region4: #{tpu_custom_call.1} parent=1 // pred_region
      %s16 = ssub.s32 256, 256
      %17 = vsyncadd [#allocation3], %s16
      %s18 = sshll.u32 [#allocation2], 4
      %s19 = int_to_ptr.vmem [resolvable:$true] %s18
      %24 = dma.hbm_to_vmem [thread:$0]  %s0, 256, %s19, [#allocation3], 128, 128, 8
    $region5: #{tpu_custom_call.1} parent=1 // pred_fallthru
      _
    // Predicated region
    $region6: #{tpu_custom_call.1} parent=1 // pred_check
      _
    $region7: #{tpu_custom_call.1} parent=1 // pred_check_branch
      %26 = sbr.rel (0) target = $region9
    $region8: #{tpu_custom_call.1} parent=1 // pred_region
      %s28 = ssub.s32 256, 256
      %29 = vsyncadd [#allocation6], %s28
      %s30 = sshll.u32 [#allocation5], 4
      %s31 = int_to_ptr.vmem [resolvable:$true] %s30
      %36 = dma.hbm_to_vmem [thread:$0]  %s1, 256, %s31, [#allocation6], 64, 64, 4
    $region9: #{tpu_custom_call.1} parent=1 // pred_fallthru
      _
    // Predicated region
    $region10: #{tpu_custom_call.1} parent=1 // pred_check
      _
    $region11: #{tpu_custom_call.1} parent=1 // pred_check_branch
      %38 = sbr.rel (0) target = $region13
    $region12: #{tpu_custom_call.1} parent=1 // pred_region
      _
    $region13: #{tpu_custom_call.1} parent=1 // pred_fallthru
      _
    // Predicated region
    $region14: #{tpu_custom_call.1} parent=1 // pred_check
      _
    $region15: #{tpu_custom_call.1} parent=1 // pred_check_branch
      %40 = sbr.rel (0) target = $region17
    $region16: #{tpu_custom_call.1} parent=1 // pred_region
      _
    $region17: #{tpu_custom_call.1} parent=1 // pred_fallthru
      _
    // Predicated region
    $region18: #{tpu_custom_call.1} parent=1 // pred_check
      _
    $region19: #{tpu_custom_call.1} parent=1 // pred_check_branch
      %42 = sbr.rel (0) target = $region21
    $region20: #{tpu_custom_call.1} parent=1 // pred_region
      _
    $region21: #{tpu_custom_call.1} parent=1 // pred_fallthru
      _
    // Predicated region
    $region22: #{tpu_custom_call.1} parent=1 // pred_check
      _
    $region23: #{tpu_custom_call.1} parent=1 // pred_check_branch
      %44 = sbr.rel (0) target = $region25
    $region24: #{tpu_custom_call.1} parent=1 // pred_region
      %45 = dma.done [#allocation3], 256
    $region25: #{tpu_custom_call.1} parent=1 // pred_fallthru
      _
    // Predicated region
    $region26: #{tpu_custom_call.1} parent=1 // pred_check
      _
    $region27: #{tpu_custom_call.1} parent=1 // pred_check_branch
      %47 = sbr.rel (0) target = $region29
    $region28: #{tpu_custom_call.1} parent=1 // pred_region
      %48 = dma.done [#allocation6], 256
    $region29: #{tpu_custom_call.1} parent=1 // pred_fallthru
      _
    %v50 = vld [vmem:[#allocation2] sm:$0xff]
    %v51 = vld [vmem:[#allocation2 + $0x8] sm:$0xff]
    %v52 = vpack.c.bf16 %v51, %v50
    %v53 = vld [vmem:[#allocation5] sm:$0xf]
    %v54 = vld [vmem:[#allocation5 + $0x4] sm:$0xf]
    %v55 = vld [vmem:[#allocation5 + $0x8] sm:$0xf]
    %v56 = vld [vmem:[#allocation5 + $0xc] sm:$0xf]
    %v57 = vld [vmem:[%s2] sm:$0x1]
    %v59 = vlaneseq
    %v60 = vshrl.u32 %v59, 7
    %v61 = vsub.s32 0, %v60
    %v62 = vrot.slane %v57, %v61
    %v68 = vunpack.c.l.b16 %v53
    %v69 = vunpack.c.l.b16 %v54
    %v70 = vunpack.c.l.b16 %v55
    %v71 = vunpack.c.l.b16 %v56
    %v72 = vpack.c.b16 %v69, %v68
    %v73 = vpack.c.b16 %v71, %v70
    %vm76 = vcmask 261120
    %v78 = vsel %vm76, %v52, 0
    %80 = vmatprep.subr.bf16.mxu0 0
    %81 = vmatpush1.bf16.msra.mxu0 %v72
    %82 = vmatprep.subr.bf16.mxu0 0
    %83 = vmatpush1.bf16.msra.mxu0 %v73
    %84 = vmatprep.subr.bf16.mxu0 0
    %85 = vmatpush1.bf16.msra.mxu0 0
    %86 = vmatprep.subr.bf16.mxu0 0
    %87 = vmatpush1.bf16.msra.mxu0 0
    %88 = vmatprep.subr.bf16.mxu0 0
    %89 = vmatpush1.bf16.msra.mxu0 0
    %90 = vmatprep.subr.bf16.mxu0 0
    %91 = vmatpush1.bf16.msra.mxu0 0
    %92 = vmatprep.subr.bf16.mxu0 0
    %93 = vmatpush1.bf16.msra.mxu0 0
    %94 = vmatprep.subr.bf16.mxu0 0
    %95 = vmatpush1.bf16.msra.mxu0 0
    %96 = vmatprep.subr.bf16.mxu0 0
    %97 = vmatpush1.bf16.msra.mxu0 0
    %98 = vmatprep.subr.bf16.mxu0 0
    %99 = vmatpush1.bf16.msra.mxu0 0
    %100 = vmatprep.subr.bf16.mxu0 0
    %101 = vmatpush1.bf16.msra.mxu0 0
    %102 = vmatprep.subr.bf16.mxu0 0
    %103 = vmatpush1.bf16.msra.mxu0 0
    %104 = vmatprep.subr.bf16.mxu0 0
    %105 = vmatpush1.bf16.msra.mxu0 0
    %106 = vmatprep.subr.bf16.mxu0 0
    %107 = vmatpush1.bf16.msra.mxu0 0
    %108 = vmatprep.subr.bf16.mxu0 0
    %109 = vmatpush1.bf16.msra.mxu0 0
    %110 = vmatprep.subr.bf16.mxu0 0
    %111 = vmatpush1.bf16.msra.mxu0 0
    %112 = vmatprep.mubr.bf16.mxu0 0
    %113 = vmatmul.mubr.bf16.gmra.mrb[0].mxu0 %v78
    %v114 = vpop.f32.mrb[0].mxu0
    %v115 = vadd.f32 %v62, %v114
    %v116 = vpop.f32.mrb[0].mxu0
    %v117 = vpop.f32.mrb[0].mxu0
    %v118 = vadd.f32 %v62, %v117
    %v119 = vpop.f32.mrb[0].mxu0
    %120 = vdwg.mxu0
    %v121 = vlaneseq
    %v122 = vshrl.u32 %v121, 7
    %v123 = vadd.s32 %v122, 8
    %v124 = vlaneseq
    %v125 = vand.u32 %v124, 127
    %s126 = smul.u32 0, 16
    %v127 = vstv %s126
    %v128 = vadd.s32 %v127, %v122
    %v129 = vadd.s32 %v127, %v123
    %v130 = vmul.u32 %v128, 32
    %v131 = vmul.u32 %v129, 32
    %v132 = vadd.s32 %v130, %v125
    %v133 = vadd.s32 %v131, %v125
    %v134 = vxor.u32 %v132, 661165874
    %v135 = vxor.u32 %v133, 661165874
    %v136 = vshrl.u32 %v134, 16
    %v137 = vshrl.u32 %v135, 16
    %v138 = vxor.u32 %v134, %v136
    %v139 = vxor.u32 %v135, %v137
    %v140 = vmul.u32 %v138, 2146121005
    %v141 = vmul.u32 %v139, 2146121005
    %v142 = vshrl.u32 %v140, 15
    %v143 = vshrl.u32 %v141, 15
    %v144 = vxor.u32 %v140, %v142
    %v145 = vxor.u32 %v141, %v143
    %v146 = vmul.u32 %v144, 2221713035
    %v147 = vmul.u32 %v145, 2221713035
    %v148 = vshrl.u32 %v146, 16
    %v149 = vshrl.u32 %v147, 16
    %v150 = vxor.u32 %v146, %v148
    %v151 = vxor.u32 %v147, %v149
    %vm152 = vcmp.ge.u32.totalorder %v150, 429496730
    %vm153 = vcmp.ge.u32.totalorder %v151, 429496730
    %v154 = vsel %vm152, 1.1111112, 0.0
    %v155 = vsel %vm153, 1.1111112, 0.0
    %v156 = vmul.f32 %v115, %v154
    %v157 = vmul.f32 %v118, %v155
    %v158 = vadd.f32 %v50, %v156
    %v159 = vadd.f32 %v51, %v157
    %v160 = vsel %vm76, %v158, 0.0
    %161 = vadd.xlane.f32.xlu0 %v160
    %v162 = vpop.xlane.xlu0 %161
    %v163 = vsel %vm76, %v159, 0.0
    %164 = vadd.xlane.f32.xlu0 %v163
    %v165 = vpop.xlane.xlu0 %164
    %v166 = vmul.f32 %v162, 0.03125
    %v167 = vmul.f32 %v165, 0.03125
    %v168 = vsub.f32 %v158, %v166
    %v169 = vsub.f32 %v159, %v167
    %v170 = vmul.f32 %v168, %v168
    %v171 = vmul.f32 %v169, %v169
    %v172 = vsel %vm76, %v170, 0.0
    %173 = vadd.xlane.f32.xlu0 %v172
    %v174 = vpop.xlane.xlu0 %173
    %v175 = vsel %vm76, %v171, 0.0
    %176 = vadd.xlane.f32.xlu0 %v175
    %v177 = vpop.xlane.xlu0 %176
    %v178 = vmul.f32 %v174, 0.032258064
    %v179 = vmul.f32 %v177, 0.032258064
    %v180 = vrsqrt.pop %v178
    %v181 = vmul.f32 %v178, %v180
    %vm182 = vcmp.eq.f32.partialorder %v178, inf
    %v183 = vsel %vm182, %v178, %v181
    %vm184 = vcmp.eq.f32.partialorder %v178, 0.0
    %v185 = vand.u32 %v178, 2147483648
    %v186 = vsel %vm184, %v185, %v183
    %v187 = vrsqrt.pop %v179
    %v188 = vmul.f32 %v179, %v187
    %vm189 = vcmp.eq.f32.partialorder %v179, inf
    %v190 = vsel %vm189, %v179, %v188
    %vm191 = vcmp.eq.f32.partialorder %v179, 0.0
    %v192 = vand.u32 %v179, 2147483648
    %v193 = vsel %vm191, %v192, %v190
    %v194 = vadd.f32 %v186, 1e-06
    %v195 = vadd.f32 %v193, 1e-06
    %v196 = vrcp.pop %v194
    %v197 = vmul.f32 1.0, %v196
    %v198 = vrcp.pop %v195
    %v199 = vmul.f32 1.0, %v198
    %v200 = vld [vmem:[%s3] sm:$0x1]
    %v201 = vmul.f32 %v168, %v197
    %v202 = vmul.f32 %v169, %v199
    %v204 = vlaneseq
    %v205 = vshrl.u32 %v204, 7
    %v206 = vsub.s32 0, %v205
    %v207 = vrot.slane %v200, %v206
    %v209 = vmul.f32 %v207, %v201
    %v210 = vmul.f32 %v207, %v202
    %v211 = vld [vmem:[%s4] sm:$0x1]
    %v213 = vlaneseq
    %v214 = vshrl.u32 %v213, 7
    %v215 = vsub.s32 0, %v214
    %v216 = vrot.slane %v211, %v215
    %v218 = vadd.f32 %v209, %v216
    %v219 = vadd.f32 %v210, %v216
    %220 = vst.msk [vmem:[#allocation7] sm:$0xff] %vm76, %v218
    %221 = vst.msk [vmem:[#allocation7 + $0x8] sm:$0xff] %vm76, %v219
    // Predicated region
    $region30: #{tpu_custom_call.1} parent=1 // pred_check
      _
    $region31: #{tpu_custom_call.1} parent=1 // pred_check_branch
      %223 = sbr.rel (0) target = $region33
    $region32: #{tpu_custom_call.1} parent=1 // pred_region
      %s225 = ssub.s32 256, 256
      %226 = vsyncadd [#allocation4], %s225
      %s227 = sshll.u32 [#allocation7], 4
      %s228 = int_to_ptr.vmem [resolvable:$true] %s227
      %233 = dma.vmem_to_hbm [thread:$0]  %s228, 256, %s5, [#allocation4], 128, 128, 8
    $region33: #{tpu_custom_call.1} parent=1 // pred_fallthru
      _
    // Predicated region
    $region34: #{tpu_custom_call.1} parent=1 // pred_check
      _
    $region35: #{tpu_custom_call.1} parent=1 // pred_check_branch
      %235 = sbr.rel (0) target = $region37
    $region36: #{tpu_custom_call.1} parent=1 // pred_region
      %236 = dma.done [#allocation4], 256
    $region37: #{tpu_custom_call.1} parent=1 // pred_fallthru
      _
    %237 = vsyncpa [#allocation3], 1
    %238 = vsyncpa [#allocation6], 1
    %239 = vsyncpa [#allocation4], 1

</llo_original>
